<compile_context>
chip_gen: v5e
topology: v5e:2x2
jax: 0.10.0
libtpu: 0.0.40
codegen_flags: <defaults>
</compile_context>

<pallas_src>
import functools

import numpy as np
import jax
import jax.numpy as jnp
from jax.experimental import pallas as pl
from jax.experimental.pallas import tpu as pltpu

EPSILON = 1e-9
LOG_EPSILON = float(np.log(EPSILON))
DOC_WEIGHTS_INIT = 0.1
LAMBDA_CONST = 100.0
NUM_SAMPLED = 15


# ----------------------------------------------------------------------------
# AliasMultinomial: table construction in numpy (deterministic), draw via
# jax.random (deterministic with a fixed key). This is glue, not kernel work.
# ----------------------------------------------------------------------------
class AliasMultinomial:
    def __init__(self, probs):
        probs = np.asarray(probs, dtype=np.float64)
        K = len(probs)
        q = np.zeros(K, dtype=np.float64)
        J = np.zeros(K, dtype=np.int64)
        smaller, larger = [], []
        for kk, prob in enumerate(probs):
            q[kk] = K * prob
            (smaller if q[kk] < 1.0 else larger).append(kk)
        while smaller and larger:
            small = smaller.pop()
            large = larger.pop()
            J[small] = large
            q[large] = q[large] - 1.0 + q[small]
            (smaller if q[large] < 1.0 else larger).append(large)
        self.q = jnp.asarray(np.clip(q, 0.0, 1.0), dtype=jnp.float32)
        self.J = jnp.asarray(J, dtype=jnp.int32)
        self.K = K

    def draw(self, key, n):
        k1, k2 = jax.random.split(key)
        r = jax.random.randint(k1, (n,), 0, self.K)
        b = jax.random.bernoulli(k2, self.q[r]).astype(jnp.int32)
        return r * b + self.J[r] * (1 - b)


# ----------------------------------------------------------------------------
# Pallas kernel, gridded over the batch dimension (per-tile partial outputs).
# ----------------------------------------------------------------------------
def _loss_kernel(doc_w_ref, topic_ref, pivot_ref, cand_ref, w_ref,
                 neg_ref, dir_ref, *, window):
    dw = doc_w_ref[...]                                    # [TB, T] f32
    # softmax / log_softmax over topics
    m = jnp.max(dw, axis=1, keepdims=True)
    e = jnp.exp(dw - m)
    s = jnp.sum(e, axis=1, keepdims=True)
    probs = e / s                                          # [TB, T]
    log_sm = (dw - m) - jnp.log(s)                         # [TB, T]

    # doc_vectors = softmax(doc_weights) @ topic_vectors  (tiny MXU matmul)
    doc_vecs = jnp.dot(probs, topic_ref[...],
                       preferred_element_type=jnp.float32)  # [TB, E]
    ctx = doc_vecs + pivot_ref[...]                          # [TB, E] f32

    # Candidate word vectors stay bf16; the f32 promotion fuses into the VPU
    # multiply (no standalone full-tile f32 copy). Reduce over E (sublanes)
    # produces a lane-dense [TB, N] dots tile.
    cand = cand_ref[...]                                     # [TB, E, N] bf16
    dots = jnp.sum(ctx[:, :, None] * cand, axis=1)           # [TB, N] f32

    # Fuse target/noise branches: +1 sign on the first `window` lanes,
    # -1 on the rest, then one log-sigmoid pass and one lane reduction.
    lane = jax.lax.broadcasted_iota(jnp.int32, dots.shape, 1)
    x = jnp.where(lane < window, dots, -dots)                # [TB, N]
    # log(max(sigmoid(x), EPS)) == max(log_sigmoid(x), log(EPS)), with the
    # stable form log_sigmoid(x) = min(x, 0) - log(1 + exp(-|x|)).
    ls = jnp.minimum(x, 0.0) - jnp.log(1.0 + jnp.exp(-jnp.abs(x)))
    ls = jnp.maximum(ls, LOG_EPSILON)
    rows = jnp.sum(ls, axis=1, keepdims=True)                # [TB, 1]

    w = w_ref[...]                                           # [TB, 1] (pre-normalized)
    neg_tile = jnp.sum(w * rows, axis=0, keepdims=True)                      # [1, 1]
    dir_tile = jnp.sum(w * jnp.sum(log_sm, axis=1, keepdims=True),
                       axis=0, keepdims=True)                                # [1, 1]
    neg_ref[...] = neg_tile.reshape(1, 1, 1)
    dir_ref[...] = dir_tile.reshape(1, 1, 1)


def lda2vec_loss(doc_w, topic_vectors, pivot_vecs, word_vectors, target_words,
                 noise_ids, w_raw, *, alpha, lambda_const, block_b=None):
    B, T = doc_w.shape
    _, W = target_words.shape
    S = noise_ids.shape[2]
    N = W * (1 + S)   # with W=8, S=15 this is exactly 128 (lane-dense)
    E = word_vectors.shape[1]

    # Hoisted normalization (must NOT be done per batch tile in the kernel):
    # w /= w.sum(); w *= batch
    w = w_raw / jnp.sum(w_raw) * B                                        # [B, 1]

    # Single bf16 table cast + single bf16 gather + one transpose to the
    # lane-dense [B, E, N] layout (was: f32 gather + concat + transpose + cast).
    wv_bf16 = word_vectors.astype(jnp.bfloat16)                           # [V, E]
    ids = jnp.concatenate([target_words, noise_ids.reshape(B, W * S)],
                          axis=1)                                         # [B, N] int
    cand = jnp.take(wv_bf16, ids, axis=0)                                 # [B, N, E] bf16
    cand = jnp.swapaxes(cand, 1, 2)                                       # [B, E, N] bf16

    # VMEM budget: scale with the chip (v7x: 64 MiB/TC; v5e/v6e: 128 MiB).
    try:
        vmem_cap = int(pltpu.get_tpu_info().vmem_capacity_bytes)
    except Exception:
        vmem_cap = 64 * 1024 * 1024
    vmem_limit = int(max(32 * 1024 * 1024,
                         min((vmem_cap * 3) // 4, 96 * 1024 * 1024)))

    if block_b is None:
        # Per batch row: 2x double-buffered bf16 candidate tile (2*2 B/elem)
        # plus the f32 multiply/reduce intermediate (4 B/elem, worst case).
        per_row = E * N * (2 * 2 + 4)
        block_b = int(vmem_limit * 0.6) // max(per_row, 1)
    b_ceil = ((B + 7) // 8) * 8
    block_b = max(8, min(int(block_b), b_ceil))
    block_b = (block_b // 8) * 8

    G = pl.cdiv(B, block_b)
    Bp = G * block_b
    if Bp != B:
        pad = Bp - B
        doc_w = jnp.pad(doc_w, ((0, pad), (0, 0)))
        pivot_vecs = jnp.pad(pivot_vecs, ((0, pad), (0, 0)))
        cand = jnp.pad(cand, ((0, pad), (0, 0), (0, 0)))
        w = jnp.pad(w, ((0, pad), (0, 0)))          # padded rows have weight 0

    kernel = functools.partial(_loss_kernel, window=W)

    neg_part, dir_part = pl.pallas_call(
        kernel,
        out_shape=(jax.ShapeDtypeStruct((G, 1, 1), jnp.float32),
                   jax.ShapeDtypeStruct((G, 1, 1), jnp.float32)),
        grid=(G,),
        in_specs=[
            pl.BlockSpec((block_b, T), lambda i: (i, 0)),          # doc_w
            pl.BlockSpec(topic_vectors.shape, lambda i: (0, 0)),   # topic table
            pl.BlockSpec((block_b, E), lambda i: (i, 0)),          # pivot
            pl.BlockSpec((block_b, E, N), lambda i: (i, 0, 0)),    # candidates (bf16)
            pl.BlockSpec((block_b, 1), lambda i: (i, 0)),          # weights
        ],
        out_specs=(pl.BlockSpec((1, 1, 1), lambda i: (i, 0, 0)),
                   pl.BlockSpec((1, 1, 1), lambda i: (i, 0, 0))),
        compiler_params=pltpu.CompilerParams(
            dimension_semantics=("parallel",),     # per-tile partials: both TCs on v7x
            vmem_limit_bytes=vmem_limit),
    )(doc_w, topic_vectors, pivot_vecs, cand, w)

    # Partial reduction + final scalings hoisted out of the kernel (f32).
    neg = -jnp.sum(neg_part) / B
    dirich = jnp.sum(dir_part) / B * (lambda_const * (1.0 - alpha))
    return neg, dirich


# ----------------------------------------------------------------------------
# Pure-JAX reference of the same forward (module semantics), for correctness.
# ----------------------------------------------------------------------------
def ref_loss(doc_w, topic_vectors, pivot_vecs, target_vecs, noise_vecs,
             w_raw, *, alpha, lambda_const):
    probs = jax.nn.softmax(doc_w, axis=1)
    log_sm = jax.nn.log_softmax(doc_w, axis=1)
    doc_vecs = jnp.dot(probs, topic_vectors,
                       precision=jax.lax.Precision.HIGHEST)
    ctx = doc_vecs + pivot_vecs
    w = w_raw[:, 0]
    w = w / w.sum() * w.shape[0]
    log_t = jnp.log(jnp.maximum(
        jax.nn.sigmoid(jnp.sum(target_vecs * ctx[:, None, :], -1)), EPSILON))
    log_n = jnp.sum(jnp.log(jnp.maximum(
        jax.nn.sigmoid(-jnp.sum(noise_vecs * ctx[:, None, None, :], -1)),
        EPSILON)), -1)
    neg = -jnp.mean(w * jnp.sum(log_t + log_n, 1))
    dirich = jnp.mean(w * jnp.sum(log_sm, 1)) * lambda_const * (1.0 - alpha)
    return neg, dirich


if __name__ == "__main__":
    key = jax.random.PRNGKey(0)
    ks = jax.random.split(key, 10)

    # small, module-consistent shapes; W*(1+NUM_SAMPLED) = 128 (lane-dense)
    B, W, S = 32, 8, NUM_SAMPLED
    emb, n_topics, vocab, n_docs = 32, 16, 64, 32
    alpha = 1.0 / n_topics

    # deterministic "parameters"
    word_vectors = jax.random.normal(ks[0], (vocab, emb), jnp.float32)
    topic_vectors = jax.random.normal(ks[1], (n_topics, emb), jnp.float32)
    doc_weight_table = DOC_WEIGHTS_INIT * jax.random.normal(
        ks[2], (n_docs, n_topics), jnp.float32)
    loss_doc_weights = jax.random.uniform(ks[3], (n_docs,), jnp.float32,
                                          0.5, 1.5)
    unigram = np.asarray(jax.random.uniform(ks[4], (vocab,)), dtype=np.float64)
    unigram = unigram / unigram.sum()

    # forward inputs
    doc_indices = jax.random.randint(ks[5], (B,), 0, n_docs)
    pivot_words = jax.random.randint(ks[6], (B,), 0, vocab)
    target_words = jax.random.randint(ks[7], (B, W), 0, vocab)

    # noise sampling via alias method (deterministic with fixed key)
    alias = AliasMultinomial(unigram)
    noise_ids = alias.draw(ks[8], B * W * S).reshape(B, W, S)

    # small embedding gathers (glue, plain JAX)
    doc_w = doc_weight_table[doc_indices]                  # [B, T]
    w_raw = loss_doc_weights[doc_indices][:, None]         # [B, 1]
    pivot_vecs = word_vectors[pivot_words]                 # [B, E]

    neg, dirich = lda2vec_loss(doc_w, topic_vectors, pivot_vecs, word_vectors,
                               target_words, noise_ids, w_raw, alpha=alpha,
                               lambda_const=LAMBDA_CONST, block_b=8)
    jax.block_until_ready((neg, dirich))

    # Reference sees the same bf16-rounded word vectors the kernel consumes.
    wv_bf = word_vectors.astype(jnp.bfloat16).astype(jnp.float32)
    target_bf = wv_bf[target_words]                        # [B, W, E]
    noise_bf = wv_bf[noise_ids]                            # [B, W, S, E]
    neg_ref, dir_ref = ref_loss(doc_w, topic_vectors, pivot_vecs, target_bf,
                                noise_bf, w_raw, alpha=alpha,
                                lambda_const=LAMBDA_CONST)
    np.testing.assert_allclose(np.asarray(neg), np.asarray(neg_ref),
                               rtol=1e-3, atol=1e-3)
    np.testing.assert_allclose(np.asarray(dirich), np.asarray(dir_ref),
                               rtol=1e-3, atol=1e-3)
    print("KERNEL_OK")
</pallas_src>

<mosaic_0001>
module attributes {stable_mosaic.version = 11 : i64} {
  func.func @_loss_kernel(%arg0: i32, %arg1: memref<8x16xf32, #tpu.memory_space<vmem>>, %arg2: memref<16x32xf32, #tpu.memory_space<vmem>>, %arg3: memref<8x32xf32, #tpu.memory_space<vmem>>, %arg4: memref<8x32x128xbf16, #tpu.memory_space<vmem>>, %arg5: memref<8x1xf32, #tpu.memory_space<vmem>>, %arg6: memref<1x1x1xf32, #tpu.memory_space<vmem>>, %arg7: memref<1x1x1xf32, #tpu.memory_space<vmem>>) attributes {dimension_semantics = [#tpu.dimension_semantics<parallel>], iteration_bounds = array<i64: 4>, scalar_prefetch = 0 : i64, scratch_operands = 0 : i64, tpu.core_type = #tpu.core_type<tc>, window_params = [{transform_indices = @transform_0, window_bounds = array<i64: 8, 16>}, {pipeline_mode = #tpu.pipeline_mode<synchronous>, transform_indices = @transform_1, window_bounds = array<i64: 16, 32>}, {transform_indices = @transform_2, window_bounds = array<i64: 8, 32>}, {transform_indices = @transform_3, window_bounds = array<i64: 8, 32, 128>}, {transform_indices = @transform_4, window_bounds = array<i64: 8, 1>}, {transform_indices = @transform_5, window_bounds = array<i64: 1, 1, 1>}, {transform_indices = @transform_6, window_bounds = array<i64: 1, 1, 1>}]} {
    %c0 = arith.constant 0 : index
    %c0_0 = arith.constant 0 : index
    %0 = vector.load %arg1[%c0, %c0_0] : memref<8x16xf32, #tpu.memory_space<vmem>>, vector<8x16xf32>
    %cst = arith.constant dense<0xFF800000> : vector<8xf32>
    %1 = vector.multi_reduction <maximumf>, %0, %cst [1] : vector<8x16xf32> to vector<8xf32>
    %2 = vector.shape_cast %1 : vector<8xf32> to vector<8x1xf32>
    %3 = vector.broadcast %2 : vector<8x1xf32> to vector<8x16xf32>
    %4 = arith.subf %0, %3 : vector<8x16xf32>
    %5 = math.exp %4 : vector<8x16xf32>
    %cst_1 = arith.constant dense<0.000000e+00> : vector<8xf32>
    %6 = vector.multi_reduction <add>, %5, %cst_1 [1] : vector<8x16xf32> to vector<8xf32>
    %7 = vector.shape_cast %6 : vector<8xf32> to vector<8x1xf32>
    %8 = vector.broadcast %7 : vector<8x1xf32> to vector<8x16xf32>
    %9 = arith.divf %5, %8 : vector<8x16xf32>
    %10 = vector.broadcast %2 : vector<8x1xf32> to vector<8x16xf32>
    %11 = arith.subf %0, %10 : vector<8x16xf32>
    %12 = math.log %7 : vector<8x1xf32>
    %13 = vector.broadcast %12 : vector<8x1xf32> to vector<8x16xf32>
    %14 = arith.subf %11, %13 : vector<8x16xf32>
    %c0_2 = arith.constant 0 : index
    %c0_3 = arith.constant 0 : index
    %15 = vector.load %arg2[%c0_2, %c0_3] : memref<16x32xf32, #tpu.memory_space<vmem>>, vector<16x32xf32>
    %cst_4 = arith.constant dense<0.000000e+00> : vector<8x32xf32>
    %16 = tpu.matmul %9, %15, %cst_4 {dimension_numbers = #tpu.dot_dimension_numbers<[1], [0], [0], [1], [0, 0, 1, 1], [], []>} : vector<8x16xf32>, vector<16x32xf32>, vector<8x32xf32> -> vector<8x32xf32>
    %c0_5 = arith.constant 0 : index
    %c0_6 = arith.constant 0 : index
    %17 = vector.load %arg3[%c0_5, %c0_6] : memref<8x32xf32, #tpu.memory_space<vmem>>, vector<8x32xf32>
    %18 = arith.addf %16, %17 : vector<8x32xf32>
    %c0_7 = arith.constant 0 : index
    %c0_8 = arith.constant 0 : index
    %c0_9 = arith.constant 0 : index
    %19 = vector.load %arg4[%c0_7, %c0_8, %c0_9] : memref<8x32x128xbf16, #tpu.memory_space<vmem>>, vector<8x32x128xbf16>
    %20 = vector.shape_cast %18 : vector<8x32xf32> to vector<8x32x1xf32>
    %21 = arith.extf %19 : vector<8x32x128xbf16> to vector<8x32x128xf32>
    %22 = vector.broadcast %20 : vector<8x32x1xf32> to vector<8x32x128xf32>
    %23 = arith.mulf %22, %21 : vector<8x32x128xf32>
    %cst_10 = arith.constant dense<0.000000e+00> : vector<8x128xf32>
    %24 = vector.multi_reduction <add>, %23, %cst_10 [1] : vector<8x32x128xf32> to vector<8x128xf32>
    %25 = tpu.iota {dimensions = array<i32: 1>} : vector<8x128xi32>
    %c8_i32 = arith.constant 8 : i32
    %26 = vector.broadcast %c8_i32 : i32 to vector<8x128xi32>
    %27 = arith.cmpi slt, %25, %26 : vector<8x128xi32>
    %cst_11 = arith.constant 0.000000e+00 : f32
    %28 = vector.broadcast %cst_11 : f32 to vector<8x128xf32>
    %29 = arith.subf %28, %24 : vector<8x128xf32>
    %30 = arith.select %27, %24, %29 : vector<8x128xi1>, vector<8x128xf32>
    %cst_12 = arith.constant 0.000000e+00 : f32
    %31 = vector.broadcast %cst_12 : f32 to vector<8x128xf32>
    %32 = arith.minimumf %30, %31 : vector<8x128xf32>
    %33 = math.absf %30 : vector<8x128xf32>
    %cst_13 = arith.constant 0.000000e+00 : f32
    %34 = vector.broadcast %cst_13 : f32 to vector<8x128xf32>
    %35 = arith.subf %34, %33 : vector<8x128xf32>
    %36 = math.exp %35 : vector<8x128xf32>
    %cst_14 = arith.constant 1.000000e+00 : f32
    %37 = vector.broadcast %cst_14 : f32 to vector<8x128xf32>
    %38 = arith.addf %37, %36 : vector<8x128xf32>
    %39 = math.log %38 : vector<8x128xf32>
    %40 = arith.subf %32, %39 : vector<8x128xf32>
    %cst_15 = arith.constant -20.7232666 : f32
    %41 = vector.broadcast %cst_15 : f32 to vector<8x128xf32>
    %42 = arith.maximumf %40, %41 : vector<8x128xf32>
    %cst_16 = arith.constant dense<0.000000e+00> : vector<8xf32>
    %43 = vector.multi_reduction <add>, %42, %cst_16 [1] : vector<8x128xf32> to vector<8xf32>
    %44 = vector.shape_cast %43 : vector<8xf32> to vector<8x1xf32>
    %c0_17 = arith.constant 0 : index
    %c0_18 = arith.constant 0 : index
    %45 = vector.load %arg5[%c0_17, %c0_18] : memref<8x1xf32, #tpu.memory_space<vmem>>, vector<8x1xf32>
    %46 = arith.mulf %45, %44 : vector<8x1xf32>
    %cst_19 = arith.constant dense<0.000000e+00> : vector<1xf32>
    %47 = vector.multi_reduction <add>, %46, %cst_19 [0] : vector<8x1xf32> to vector<1xf32>
    %48 = vector.shape_cast %47 : vector<1xf32> to vector<1x1xf32>
    %cst_20 = arith.constant dense<0.000000e+00> : vector<8xf32>
    %49 = vector.multi_reduction <add>, %14, %cst_20 [1] : vector<8x16xf32> to vector<8xf32>
    %50 = vector.shape_cast %49 : vector<8xf32> to vector<8x1xf32>
    %51 = arith.mulf %45, %50 : vector<8x1xf32>
    %cst_21 = arith.constant dense<0.000000e+00> : vector<1xf32>
    %52 = vector.multi_reduction <add>, %51, %cst_21 [0] : vector<8x1xf32> to vector<1xf32>
    %53 = vector.shape_cast %52 : vector<1xf32> to vector<1x1xf32>
    %54 = vector.shape_cast %48 : vector<1x1xf32> to vector<1x1x1xf32>
    %c0_22 = arith.constant 0 : index
    %c0_23 = arith.constant 0 : index
    %c0_24 = arith.constant 0 : index
    %55 = vector.load %arg6[%c0_22, %c0_23, %c0_24] : memref<1x1x1xf32, #tpu.memory_space<vmem>>, vector<1x1x1xf32>
    tpu.vector_store %arg6[%c0_22, %c0_23, %c0_24], %54 {strides = array<i32>} : memref<1x1x1xf32, #tpu.memory_space<vmem>>, vector<1x1x1xf32>,
    %56 = vector.shape_cast %53 : vector<1x1xf32> to vector<1x1x1xf32>
    %c0_25 = arith.constant 0 : index
    %c0_26 = arith.constant 0 : index
    %c0_27 = arith.constant 0 : index
    %57 = vector.load %arg7[%c0_25, %c0_26, %c0_27] : memref<1x1x1xf32, #tpu.memory_space<vmem>>, vector<1x1x1xf32>
    tpu.vector_store %arg7[%c0_25, %c0_26, %c0_27], %56 {strides = array<i32>} : memref<1x1x1xf32, #tpu.memory_space<vmem>>, vector<1x1x1xf32>,
    return
  }
  func.func @transform_0(%arg0: i32) -> (i32, i32) {
    %c0_i32 = arith.constant 0 : i32
    %c0_i32_0 = arith.constant 0 : i32
    return %arg0, %c0_i32 : i32, i32
  }
  func.func @transform_1(%arg0: i32) -> (i32, i32) {
    %c0_i32 = arith.constant 0 : i32
    %c0_i32_0 = arith.constant 0 : i32
    %c0_i32_1 = arith.constant 0 : i32
    return %c0_i32, %c0_i32_0 : i32, i32
  }
  func.func @transform_2(%arg0: i32) -> (i32, i32) {
    %c0_i32 = arith.constant 0 : i32
    %c0_i32_0 = arith.constant 0 : i32
    return %arg0, %c0_i32 : i32, i32
  }
  func.func @transform_3(%arg0: i32) -> (i32, i32, i32) {
    %c0_i32 = arith.constant 0 : i32
    %c0_i32_0 = arith.constant 0 : i32
    %c0_i32_1 = arith.constant 0 : i32
    return %arg0, %c0_i32, %c0_i32_0 : i32, i32, i32
  }
  func.func @transform_4(%arg0: i32) -> (i32, i32) {
    %c0_i32 = arith.constant 0 : i32
    %c0_i32_0 = arith.constant 0 : i32
    return %arg0, %c0_i32 : i32, i32
  }
  func.func @transform_5(%arg0: i32) -> (i32, i32, i32) {
    %c0_i32 = arith.constant 0 : i32
    %c0_i32_0 = arith.constant 0 : i32
    %c0_i32_1 = arith.constant 0 : i32
    return %arg0, %c0_i32, %c0_i32_0 : i32, i32, i32
  }
  func.func @transform_6(%arg0: i32) -> (i32, i32, i32) {
    %c0_i32 = arith.constant 0 : i32
    %c0_i32_0 = arith.constant 0 : i32
    %c0_i32_1 = arith.constant 0 : i32
    return %arg0, %c0_i32, %c0_i32_0 : i32, i32, i32
  }
}

</mosaic_0001>

<llo_original>
// kernel: tpu_custom_call.1
$region0: #{tpu_custom_call.1}
  #allocation0 [shape = 'u32[]', space=smem, size = 0x4, offset = 0x4, fixed_abs, tag = 'smem constant byte address 0x4 - core index']
  #allocation1 [shape = 'u32[72,128]{1,0:T(1,128)}', space=vmem, size = 0x9000, scoped, tag = 'internal scratch']
  %s0 = inlined_call_operand.vmem [shape: f32[32,16], index: 0, kind: input, shape index: {}]
  %s1 = inlined_call_operand.vmem [shape: f32[16,32], index: 1, kind: input, shape index: {}]
  %s2 = inlined_call_operand.vmem [shape: f32[32,32], index: 2, kind: input, shape index: {}]
  %s3 = inlined_call_operand.hbm [shape: bf16[32,32,128], index: 3, kind: input, shape index: {}]
  %s4 = inlined_call_operand.vmem [shape: f32[32,1], index: 4, kind: input, shape index: {}]
  %s5 = inlined_call_operand.vmem [shape: f32[4,1,1], index: 5, kind: output, shape index: {0}]
  %s6 = inlined_call_operand.vmem [shape: f32[4,1,1], index: 6, kind: output, shape index: {1}]
  %7 = xla_tuple %s5, %s6
  %s8 = sld [smem:[#allocation0]]
  $region65: #{tpu_custom_call.1} parent=0
    _
  %s10 = ssub.s32 1, %s8
  %s11 = scalar_select 0, %s10, %s8
  $region1: #{tpu_custom_call.1} parent=0
    #allocation2 [shape = 'u8[131072]{0}', space=vmem, size = 0x20000, scoped, tag = 'input window, operand 3']
    #allocation3 [shape = 's32[2]{0}', space=sflag, size = 0x8, scoped, tag = 'scoped memory for tpu_custom_call.1']
    %12 = vsyncpa [#allocation3], 0
    %s13 = scalar_lea.sflag [#allocation3], 1
    %14 = vsyncpa %s13, 0
    loop: start=0, step=1, limit=6
    $region2: #{tpu_custom_call.1} parent=1 // loop_pre_header
      _
    $region3: #{tpu_custom_call.1} parent=1 // loop_header
      %s16 = sphi 0, %s20
      %p17 = scmp.ge.s32.totalorder %s16, 6
      %s26 = sphi 0, %s28
      %s29 = sphi 0, %s26
      %s30 = sphi 0, %s29
      %s46 = sphi 0, %s30
      %s50 = sphi 0, %s50
      %s52 = sphi 0, %s50
      %s53 = sphi 0, %s52
      %s67 = sphi 0, %s53
      %s73 = sphi 0, %s75
      %s76 = sphi 0, %s73
      %s77 = sphi 0, %s76
      %s93 = sphi 0, %s77
      %s99 = sphi 0, %s101
      %s102 = sphi 0, %s99
      %s103 = sphi 0, %s102
      %s119 = sphi 0, %s103
      %s125 = sphi 0, %s127
      %s128 = sphi 0, %s125
      %s129 = sphi 0, %s128
      %s145 = sphi 0, %s129
      %s151 = sphi 0, %s153
      %s154 = sphi 0, %s151
      %s155 = sphi 0, %s154
      %s171 = sphi 0, %s155
      %s177 = sphi 0, %s179
      %s180 = sphi 0, %s177
      %s181 = sphi 0, %s180
      %s197 = sphi 0, %s181
    $region4: #{tpu_custom_call.1} parent=1 // loop_header_branch
      %19 = sbr.rel (%p17) target = $region8
    $region5: #{tpu_custom_call.1} parent=1 // loop_body
      %s21 = ssub.s32 %s16, 1
      %s22 = ssub.s32 %s16, 2
      %s23 = sadd.s32 %s16, 1
      %s24 = ssub.s32 %s16, %s23
      %p25 = scmp.eq.s32.totalorder %s24, 0
      %s27 = sadd.s32 %s26, 1
      %s28 = scalar_select %p25, %s26, %s27
      %p31 = pneg %p25
      %p32 = scmp.eq.s32.totalorder %s16, 3
      %p33 = por %p31, %p32
      %p34 = scmp.ne.s32.totalorder %s26, %s29
      %p35 = scmp.eq.s32.totalorder %s16, 0
      %p36 = por %p34, %p35
      %p37 = scmp.ne.s32.totalorder %s26, %s29
      %p38 = scmp.eq.s32.totalorder %s21, 3
      %p39 = por %p37, %p38
      %p40 = scmp.ne.s32.totalorder %s29, %s30
      %p41 = scmp.eq.s32.totalorder %s21, 0
      %p42 = por %p40, %p41
      %p43 = scmp.ne.s32.totalorder %s29, %s30
      %p44 = scmp.eq.s32.totalorder %s22, 3
      %p45 = por %p43, %p44
      %p47 = scmp.ne.s32.totalorder %s30, %s46
      %p48 = scmp.eq.s32.totalorder %s22, 0
      %p49 = por %p47, %p48
      %s51 = sadd.s32 %s50, 1
      %p54 = scmp.eq.s32.totalorder %s16, 3
      %p55 = scmp.ne.s32.totalorder %s50, %s52
      %p56 = scmp.eq.s32.totalorder %s16, 0
      %p57 = por %p55, %p56
      %p58 = scmp.ne.s32.totalorder %s50, %s52
      %p59 = scmp.eq.s32.totalorder %s21, 3
      %p60 = por %p58, %p59
      %p61 = scmp.ne.s32.totalorder %s52, %s53
      %p62 = scmp.eq.s32.totalorder %s21, 0
      %p63 = por %p61, %p62
      %p64 = scmp.ne.s32.totalorder %s52, %s53
      %p65 = scmp.eq.s32.totalorder %s22, 3
      %p66 = por %p64, %p65
      %p68 = scmp.ne.s32.totalorder %s53, %s67
      %p69 = scmp.eq.s32.totalorder %s22, 0
      %p70 = por %p68, %p69
      %s71 = ssub.s32 %s16, %s23
      %p72 = scmp.eq.s32.totalorder %s71, 0
      %s74 = sadd.s32 %s73, 1
      %s75 = scalar_select %p72, %s73, %s74
      %p78 = pneg %p72
      %p79 = scmp.eq.s32.totalorder %s16, 3
      %p80 = por %p78, %p79
      %p81 = scmp.ne.s32.totalorder %s73, %s76
      %p82 = scmp.eq.s32.totalorder %s16, 0
      %p83 = por %p81, %p82
      %p84 = scmp.ne.s32.totalorder %s73, %s76
      %p85 = scmp.eq.s32.totalorder %s21, 3
      %p86 = por %p84, %p85
      %p87 = scmp.ne.s32.totalorder %s76, %s77
      %p88 = scmp.eq.s32.totalorder %s21, 0
      %p89 = por %p87, %p88
      %p90 = scmp.ne.s32.totalorder %s76, %s77
      %p91 = scmp.eq.s32.totalorder %s22, 3
      %p92 = por %p90, %p91
      %p94 = scmp.ne.s32.totalorder %s77, %s93
      %p95 = scmp.eq.s32.totalorder %s22, 0
      %p96 = por %p94, %p95
      %s97 = ssub.s32 %s16, %s23
      %p98 = scmp.eq.s32.totalorder %s97, 0
      %s100 = sadd.s32 %s99, 1
      %s101 = scalar_select %p98, %s99, %s100
      %p104 = pneg %p98
      %p105 = scmp.eq.s32.totalorder %s16, 3
      %p106 = por %p104, %p105
      %p107 = scmp.ne.s32.totalorder %s99, %s102
      %p108 = scmp.eq.s32.totalorder %s16, 0
      %p109 = por %p107, %p108
      %p110 = scmp.ne.s32.totalorder %s99, %s102
      %p111 = scmp.eq.s32.totalorder %s21, 3
      %p112 = por %p110, %p111
      %p113 = scmp.ne.s32.totalorder %s102, %s103
      %p114 = scmp.eq.s32.totalorder %s21, 0
      %p115 = por %p113, %p114
      %p116 = scmp.ne.s32.totalorder %s102, %s103
      %p117 = scmp.eq.s32.totalorder %s22, 3
      %p118 = por %p116, %p117
      %p120 = scmp.ne.s32.totalorder %s103, %s119
      %p121 = scmp.eq.s32.totalorder %s22, 0
      %p122 = por %p120, %p121
      %s123 = ssub.s32 %s16, %s23
      %p124 = scmp.eq.s32.totalorder %s123, 0
      %s126 = sadd.s32 %s125, 1
      %s127 = scalar_select %p124, %s125, %s126
      %p130 = pneg %p124
      %p131 = scmp.eq.s32.totalorder %s16, 3
      %p132 = por %p130, %p131
      %p133 = scmp.ne.s32.totalorder %s125, %s128
      %p134 = scmp.eq.s32.totalorder %s16, 0
      %p135 = por %p133, %p134
      %p136 = scmp.ne.s32.totalorder %s125, %s128
      %p137 = scmp.eq.s32.totalorder %s21, 3
      %p138 = por %p136, %p137
      %p139 = scmp.ne.s32.totalorder %s128, %s129
      %p140 = scmp.eq.s32.totalorder %s21, 0
      %p141 = por %p139, %p140
      %p142 = scmp.ne.s32.totalorder %s128, %s129
      %p143 = scmp.eq.s32.totalorder %s22, 3
      %p144 = por %p142, %p143
      %p146 = scmp.ne.s32.totalorder %s129, %s145
      %p147 = scmp.eq.s32.totalorder %s22, 0
      %p148 = por %p146, %p147
      %s149 = ssub.s32 %s16, %s23
      %p150 = scmp.eq.s32.totalorder %s149, 0
      %s152 = sadd.s32 %s151, 1
      %s153 = scalar_select %p150, %s151, %s152
      %p156 = pneg %p150
      %p157 = scmp.eq.s32.totalorder %s16, 3
      %p158 = por %p156, %p157
      %p159 = scmp.ne.s32.totalorder %s151, %s154
      %p160 = scmp.eq.s32.totalorder %s16, 0
      %p161 = por %p159, %p160
      %p162 = scmp.ne.s32.totalorder %s151, %s154
      %p163 = scmp.eq.s32.totalorder %s21, 3
      %p164 = por %p162, %p163
      %p165 = scmp.ne.s32.totalorder %s154, %s155
      %p166 = scmp.eq.s32.totalorder %s21, 0
      %p167 = por %p165, %p166
      %p168 = scmp.ne.s32.totalorder %s154, %s155
      %p169 = scmp.eq.s32.totalorder %s22, 3
      %p170 = por %p168, %p169
      %p172 = scmp.ne.s32.totalorder %s155, %s171
      %p173 = scmp.eq.s32.totalorder %s22, 0
      %p174 = por %p172, %p173
      %s175 = ssub.s32 %s16, %s23
      %p176 = scmp.eq.s32.totalorder %s175, 0
      %s178 = sadd.s32 %s177, 1
      %s179 = scalar_select %p176, %s177, %s178
      %p182 = pneg %p176
      %p183 = scmp.eq.s32.totalorder %s16, 3
      %p184 = por %p182, %p183
      %p185 = scmp.ne.s32.totalorder %s177, %s180
      %p186 = scmp.eq.s32.totalorder %s16, 0
      %p187 = por %p185, %p186
      %p188 = scmp.ne.s32.totalorder %s177, %s180
      %p189 = scmp.eq.s32.totalorder %s21, 3
      %p190 = por %p188, %p189
      %p191 = scmp.ne.s32.totalorder %s180, %s181
      %p192 = scmp.eq.s32.totalorder %s21, 0
      %p193 = por %p191, %p192
      %p194 = scmp.ne.s32.totalorder %s180, %s181
      %p195 = scmp.eq.s32.totalorder %s22, 3
      %p196 = por %p194, %p195
      %p198 = scmp.ne.s32.totalorder %s181, %s197
      %p199 = scmp.eq.s32.totalorder %s22, 0
      %p200 = por %p198, %p199
      %p201 = scmp.le.s32.totalorder 1, %s16
      %p202 = scmp.lt.s32.totalorder %s16, 5
      %p203 = pnand %p201, %p202
      %p204 = pneg %p203
      // Predicated region
      $region9: #{tpu_custom_call.1} parent=5 // pred_check
        _
      $region10: #{tpu_custom_call.1} parent=5 // pred_check_branch
        %206 = sbr.rel (%p203) target = $region12
      $region11: #{tpu_custom_call.1} parent=5 // pred_region
        %s207 = ssub.s32 %s16, 1
        // Predicated region
        $region13: #{tpu_custom_call.1} parent=11 // pred_check
          %p208 = pneg %p63
        $region14: #{tpu_custom_call.1} parent=11 // pred_check_branch
          %210 = sbr.rel (%p208) target = $region16
        $region15: #{tpu_custom_call.1} parent=11 // pred_region
          _
        $region16: #{tpu_custom_call.1} parent=11 // pred_fallthru
          _
      $region12: #{tpu_custom_call.1} parent=5 // pred_fallthru
        _
      %p211 = scmp.lt.s32.totalorder %s16, 4
      // Predicated region
      $region17: #{tpu_custom_call.1} parent=5 // pred_check
        %p212 = pneg %p211
      $region18: #{tpu_custom_call.1} parent=5 // pred_check_branch
        %214 = sbr.rel (%p212) target = $region20
      $region19: #{tpu_custom_call.1} parent=5 // pred_region
        // Predicated region
        $region21: #{tpu_custom_call.1} parent=19 // pred_check
          %p215 = pneg %p36
        $region22: #{tpu_custom_call.1} parent=19 // pred_check_branch
          %217 = sbr.rel (%p215) target = $region24
        $region23: #{tpu_custom_call.1} parent=19 // pred_region
          %p218 = scmp.lt.s32.totalorder %s16, 3
          %s219 = scalar_select %p218, %s16, 3
          %s220 = smul.addr %s219, 8
          %s221 = scalar_lea.vmem %s0, %s220
        $region24: #{tpu_custom_call.1} parent=19 // pred_fallthru
          _
        // Predicated region
        $region25: #{tpu_custom_call.1} parent=19 // pred_check
          %p222 = pneg %p83
        $region26: #{tpu_custom_call.1} parent=19 // pred_check_branch
          %224 = sbr.rel (%p222) target = $region28
        $region27: #{tpu_custom_call.1} parent=19 // pred_region
          %p225 = scmp.lt.s32.totalorder %s16, 3
          %s226 = scalar_select %p225, %s16, 3
          %s227 = smul.addr %s226, 8
          %s228 = scalar_lea.vmem %s2, %s227
        $region28: #{tpu_custom_call.1} parent=19 // pred_fallthru
          _
        // Predicated region
        $region29: #{tpu_custom_call.1} parent=19 // pred_check
          %p229 = pneg %p109
        $region30: #{tpu_custom_call.1} parent=19 // pred_check_branch
          %231 = sbr.rel (%p229) target = $region32
        $region31: #{tpu_custom_call.1} parent=19 // pred_region
          %s232 = sand.u32 %s99, 1
          %s233 = scalar_lea.sflag [#allocation3], %s232
          %s234 = sand.u32 %s99, 1
          %s235 = smul.addr %s234, 128
          %s236 = scalar_lea.vmem [#allocation2], %s235
          %s237 = smul.u32 8, %s16
          %239 = vsyncadd %s233, 0
          %s240 = smul.addr %s237, 4
          %s241 = smul.addr %s240, 4
          %s242 = scalar_lea.hbm %s3, %s241
          %s243 = sshll.u32 %s242, 4
          %s244 = int_to_ptr.hbm [resolvable:$true] %s243
          %s245 = sshll.u32 %s236, 4
          %s246 = int_to_ptr.vmem [resolvable:$true] %s245
          %251 = dma.hbm_to_vmem [thread:$0]  %s244, 2048, %s246, %s233, 64, 64, 4
        $region32: #{tpu_custom_call.1} parent=19 // pred_fallthru
          _
        // Predicated region
        $region33: #{tpu_custom_call.1} parent=19 // pred_check
          %p252 = pneg %p135
        $region34: #{tpu_custom_call.1} parent=19 // pred_check_branch
          %254 = sbr.rel (%p252) target = $region36
        $region35: #{tpu_custom_call.1} parent=19 // pred_region
          %p255 = scmp.lt.s32.totalorder %s16, 3
          %s256 = scalar_select %p255, %s16, 3
          %s257 = smul.addr %s256, 8
          %s258 = scalar_lea.vmem %s4, %s257
        $region36: #{tpu_custom_call.1} parent=19 // pred_fallthru
          _
      $region20: #{tpu_custom_call.1} parent=5 // pred_fallthru
        _
      %p259 = scmp.le.s32.totalorder 1, %s16
      %p260 = scmp.lt.s32.totalorder %s16, 5
      %p261 = pnand %p259, %p260
      %p262 = pneg %p261
      // Predicated region
      $region37: #{tpu_custom_call.1} parent=5 // pred_check
        _
      $region38: #{tpu_custom_call.1} parent=5 // pred_check_branch
        %264 = sbr.rel (%p261) target = $region40
      $region39: #{tpu_custom_call.1} parent=5 // pred_region
        %s265 = ssub.s32 %s16, 1
        %s266 = sand.u32 %s102, 1
        %s267 = scalar_lea.sflag [#allocation3], %s266
        %s268 = sand.u32 %s102, 1
        %s269 = smul.addr %s268, 128
        %s270 = scalar_lea.vmem [#allocation2], %s269
        // Predicated region
        $region41: #{tpu_custom_call.1} parent=39 // pred_check
          %p271 = pneg %p115
        $region42: #{tpu_custom_call.1} parent=39 // pred_check_branch
          %273 = sbr.rel (%p271) target = $region44
        $region43: #{tpu_custom_call.1} parent=39 // pred_region
          %275 = dma.done %s267, 2048
        $region44: #{tpu_custom_call.1} parent=39 // pred_fallthru
          _
        %p276 = scmp.lt.s32.totalorder %s21, 3
        %s277 = scalar_select %p276, %s21, 3
        %s278 = smul.addr %s277, 8
        %s279 = scalar_lea.vmem %s0, %s278
        %p280 = pneg %p42
        %p281 = pneg %p39
        %p282 = pneg %p63
        %p283 = pneg %p60
        %p284 = scmp.lt.s32.totalorder %s21, 3
        %s285 = scalar_select %p284, %s21, 3
        %s286 = smul.addr %s285, 8
        %s287 = scalar_lea.vmem %s2, %s286
        %p288 = pneg %p89
        %p289 = pneg %p86
        %s290 = sand.u32 %s102, 1
        %s291 = scalar_lea.sflag [#allocation3], %s290
        %s292 = sand.u32 %s102, 1
        %s293 = smul.addr %s292, 128
        %s294 = scalar_lea.vmem [#allocation2], %s293
        %p295 = pneg %p115
        %p296 = pneg %p112
        %p297 = scmp.lt.s32.totalorder %s21, 3
        %s298 = scalar_select %p297, %s21, 3
        %s299 = smul.addr %s298, 8
        %s300 = scalar_lea.vmem %s4, %s299
        %p301 = pneg %p141
        %p302 = pneg %p138
        %p303 = pneg %p167
        %p304 = pneg %p164
        %p305 = scmp.lt.s32.totalorder %s21, 3
        %s306 = scalar_select %p305, %s21, 3
        %s307 = scalar_lea.vmem %s5, %s306
        %p308 = pneg %p193
        %p309 = pneg %p190
        %p310 = scmp.lt.s32.totalorder %s21, 3
        %s311 = scalar_select %p310, %s21, 3
        %s312 = scalar_lea.vmem %s6, %s311
        %p313 = scmp.lt.s32.totalorder %s21, 3
        %s314 = scalar_select %p313, %s21, 3
        %s315 = smul.addr %s314, 8
        %s316 = scalar_lea.vmem %s0, %s315
        %p317 = scmp.lt.s32.totalorder %s21, 3
        %s318 = scalar_select %p317, %s21, 3
        %s319 = smul.addr %s318, 8
        %s320 = scalar_lea.vmem %s2, %s319
        %s321 = smul.u32 8, %s21
        %p322 = scmp.lt.s32.totalorder %s21, 3
        %s323 = scalar_select %p322, %s21, 3
        %s324 = smul.addr %s323, 8
        %s325 = scalar_lea.vmem %s4, %s324
        %p326 = scmp.lt.s32.totalorder %s21, 3
        %s327 = scalar_select %p326, %s21, 3
        %s328 = scalar_lea.vmem %s5, %s327
        %p329 = scmp.lt.s32.totalorder %s21, 3
        %s330 = scalar_select %p329, %s21, 3
        %s331 = scalar_lea.vmem %s6, %s330
        %v332 = vld [vmem:[%s316] sm:$0xff]
        %vm333 = vcmask 130048
        %v334 = vsel %vm333, %v332, -inf
        %335 = vmax.xlane.f32.xlu0 %v334
        %v336 = vpop.xlane.xlu0 %335
        %v337 = vsub.f32 %v332, %v336
        %v338 = vmul.f32 %v337, 1.442695
        %v339 = vpow.pop %v338
        %v340 = vsel %vm333, %v339, 0.0
        %341 = vadd.xlane.f32.xlu0 %v340
        %v342 = vpop.xlane.xlu0 %341
        %v343 = vrcp.pop %v342
        %v344 = vmul.f32 %v342, %v343
        %v345 = vsub.f32 1.0, %v344
        %v346 = vmul.f32 %v343, %v345
        %v347 = vadd.f32 %v343, %v346
        %vm348 = vweird.f32 %v342
        %vm349 = vweird.f32 %v343
        %vm350 = vmor %vm348, %vm349
        %v351 = vsel %vm350, %v343, %v347
        %v352 = vand.u32 2147483647, %v342
        %vm353 = vcmp.eq.f32.partialorder %v352, 8.507059e+37
        %v354 = vand.u32 %v342, 2147483648
        %v355 = vor.u32 1.1754944e-38, %v354
        %v356 = vsel %vm353, %v355, %v351
        %v357 = vmul.f32 %v339, %v356
        %v358 = vlog2.pop %v342
        %v359 = vmul.f32 %v358, 0.6931472
        %v360 = vsub.f32 %v337, %v359
        %v361 = vld [vmem:[%s1] sm:$0xff]
        %v362 = vld [vmem:[%s1 + $0x8] sm:$0xff]
        %v363 = vld [vmem:[%s320] sm:$0xff]
        %v365 = vsel %vm333, %v357, 0
        %367 = vmatpush.msra.mxu0 0.0
        %368 = vmatpush.msra.mxu0 0.0
        %369 = vmatpush.msra.mxu0 0.0
        %370 = vmatpush.msra.mxu0 0.0
        %371 = vmatpush.msra.mxu0 0.0
        %372 = vmatpush.msra.mxu0 0.0
        %373 = vmatpush.msra.mxu0 0.0
        %374 = vmatpush.msra.mxu0 0.0
        %375 = vmatpush.msra.mxu0 0.0
        %376 = vmatpush.msra.mxu0 0.0
        %377 = vmatpush.msra.mxu0 0.0
        %378 = vmatpush.msra.mxu0 0.0
        %379 = vmatpush.msra.mxu0 0.0
        %380 = vmatpush.msra.mxu0 0.0
        %381 = vmatpush.msra.mxu0 %v362
        %382 = vmatpush.msra.mxu0 %v361
        %383 = vmatmul.f32.gmra.mxu0 %v365
        %v384 = vpop.f32.mrf.mxu0
        %v385 = vadd.f32 %v363, %v384
        %386 = vdwg.mxu0
        %v387 = vld [vmem:[%s270] sm:$0xf]
        %v388 = vld [vmem:[%s270 + $0x4] sm:$0xf]
        %v389 = vld [vmem:[%s270 + $0x8] sm:$0xf]
        %v390 = vld [vmem:[%s270 + $0xc] sm:$0xf]
        %v391 = vld [vmem:[%s270 + $0x10] sm:$0xf]
        %v392 = vld [vmem:[%s270 + $0x14] sm:$0xf]
        %v393 = vld [vmem:[%s270 + $0x18] sm:$0xf]
        %v394 = vld [vmem:[%s270 + $0x1c] sm:$0xf]
        %v395 = vld [vmem:[%s270 + $0x20] sm:$0xf]
        %v396 = vld [vmem:[%s270 + $0x24] sm:$0xf]
        %v397 = vld [vmem:[%s270 + $0x28] sm:$0xf]
        %v398 = vld [vmem:[%s270 + $0x2c] sm:$0xf]
        %v399 = vld [vmem:[%s270 + $0x30] sm:$0xf]
        %v400 = vld [vmem:[%s270 + $0x34] sm:$0xf]
        %v401 = vld [vmem:[%s270 + $0x38] sm:$0xf]
        %v402 = vld [vmem:[%s270 + $0x3c] sm:$0xf]
        %v403 = vld [vmem:[%s270 + $0x40] sm:$0xf]
        %v404 = vld [vmem:[%s270 + $0x44] sm:$0xf]
        %v405 = vld [vmem:[%s270 + $0x48] sm:$0xf]
        %v406 = vld [vmem:[%s270 + $0x4c] sm:$0xf]
        %v407 = vld [vmem:[%s270 + $0x50] sm:$0xf]
        %v408 = vld [vmem:[%s270 + $0x54] sm:$0xf]
        %v409 = vld [vmem:[%s270 + $0x58] sm:$0xf]
        %v410 = vld [vmem:[%s270 + $0x5c] sm:$0xf]
        %v411 = vld [vmem:[%s270 + $0x60] sm:$0xf]
        %v412 = vld [vmem:[%s270 + $0x64] sm:$0xf]
        %v413 = vld [vmem:[%s270 + $0x68] sm:$0xf]
        %v414 = vld [vmem:[%s270 + $0x6c] sm:$0xf]
        %v415 = vld [vmem:[%s270 + $0x70] sm:$0xf]
        %v416 = vld [vmem:[%s270 + $0x74] sm:$0xf]
        %v417 = vld [vmem:[%s270 + $0x78] sm:$0xf]
        %v418 = vld [vmem:[%s270 + $0x7c] sm:$0xf]
        %v419 = vperm.slane %v385, 0
        %v420 = vlaneseq
        %v421 = vshrl.u32 %v420, 7
        %423 = vset.pattern.permute.xlu0 %v421
        %424 = vperm.xlu0 %423, %v419
        %v425 = vpop.permute.xlu0 %424
        %v426 = vlaneseq
        %v427 = vshrl.u32 %v426, 7
        %v428 = vadd.s32 %v427, 8
        %429 = vset.pattern.permute.xlu0 %v428
        %430 = vperm.xlu0 %429, %v419
        %v431 = vpop.permute.xlu0 %430
        %v432 = vlaneseq
        %v433 = vshrl.u32 %v432, 7
        %v434 = vadd.s32 %v433, 16
        %435 = vset.pattern.permute.xlu0 %v434
        %436 = vperm.xlu0 %435, %v419
        %v437 = vpop.permute.xlu0 %436
        %v438 = vlaneseq
        %v439 = vshrl.u32 %v438, 7
        %v440 = vadd.s32 %v439, 24
        %441 = vset.pattern.permute.xlu0 %v440
        %442 = vperm.xlu0 %441, %v419
        %v443 = vpop.permute.xlu0 %442
        %v444 = vperm.slane %v385, 1
        %v445 = vlaneseq
        %v446 = vshrl.u32 %v445, 7
        %448 = vset.pattern.permute.xlu0 %v446
        %449 = vperm.xlu0 %448, %v444
        %v450 = vpop.permute.xlu0 %449
        %v451 = vlaneseq
        %v452 = vshrl.u32 %v451, 7
        %v453 = vadd.s32 %v452, 8
        %454 = vset.pattern.permute.xlu0 %v453
        %455 = vperm.xlu0 %454, %v444
        %v456 = vpop.permute.xlu0 %455
        %v457 = vlaneseq
        %v458 = vshrl.u32 %v457, 7
        %v459 = vadd.s32 %v458, 16
        %460 = vset.pattern.permute.xlu0 %v459
        %461 = vperm.xlu0 %460, %v444
        %v462 = vpop.permute.xlu0 %461
        %v463 = vlaneseq
        %v464 = vshrl.u32 %v463, 7
        %v465 = vadd.s32 %v464, 24
        %466 = vset.pattern.permute.xlu0 %v465
        %467 = vperm.xlu0 %466, %v444
        %v468 = vpop.permute.xlu0 %467
        %v469 = vperm.slane %v385, 2
        %v470 = vlaneseq
        %v471 = vshrl.u32 %v470, 7
        %473 = vset.pattern.permute.xlu0 %v471
        %474 = vperm.xlu0 %473, %v469
        %v475 = vpop.permute.xlu0 %474
        %v476 = vlaneseq
        %v477 = vshrl.u32 %v476, 7
        %v478 = vadd.s32 %v477, 8
        %479 = vset.pattern.permute.xlu0 %v478
        %480 = vperm.xlu0 %479, %v469
        %v481 = vpop.permute.xlu0 %480
        %v482 = vlaneseq
        %v483 = vshrl.u32 %v482, 7
        %v484 = vadd.s32 %v483, 16
        %485 = vset.pattern.permute.xlu0 %v484
        %486 = vperm.xlu0 %485, %v469
        %v487 = vpop.permute.xlu0 %486
        %v488 = vlaneseq
        %v489 = vshrl.u32 %v488, 7
        %v490 = vadd.s32 %v489, 24
        %491 = vset.pattern.permute.xlu0 %v490
        %492 = vperm.xlu0 %491, %v469
        %v493 = vpop.permute.xlu0 %492
        %v494 = vperm.slane %v385, 3
        %v495 = vlaneseq
        %v496 = vshrl.u32 %v495, 7
        %498 = vset.pattern.permute.xlu0 %v496
        %499 = vperm.xlu0 %498, %v494
        %v500 = vpop.permute.xlu0 %499
        %v501 = vlaneseq
        %v502 = vshrl.u32 %v501, 7
        %v503 = vadd.s32 %v502, 8
        %504 = vset.pattern.permute.xlu0 %v503
        %505 = vperm.xlu0 %504, %v494
        %v506 = vpop.permute.xlu0 %505
        %v507 = vlaneseq
        %v508 = vshrl.u32 %v507, 7
        %v509 = vadd.s32 %v508, 16
        %510 = vset.pattern.permute.xlu0 %v509
        %511 = vperm.xlu0 %510, %v494
        %v512 = vpop.permute.xlu0 %511
        %v513 = vlaneseq
        %v514 = vshrl.u32 %v513, 7
        %v515 = vadd.s32 %v514, 24
        %516 = vset.pattern.permute.xlu0 %v515
        %517 = vperm.xlu0 %516, %v494
        %v518 = vpop.permute.xlu0 %517
        %v519 = vperm.slane %v385, 4
        %v520 = vlaneseq
        %v521 = vshrl.u32 %v520, 7
        %523 = vset.pattern.permute.xlu0 %v521
        %524 = vperm.xlu0 %523, %v519
        %v525 = vpop.permute.xlu0 %524
        %v526 = vlaneseq
        %v527 = vshrl.u32 %v526, 7
        %v528 = vadd.s32 %v527, 8
        %529 = vset.pattern.permute.xlu0 %v528
        %530 = vperm.xlu0 %529, %v519
        %v531 = vpop.permute.xlu0 %530
        %v532 = vlaneseq
        %v533 = vshrl.u32 %v532, 7
        %v534 = vadd.s32 %v533, 16
        %535 = vset.pattern.permute.xlu0 %v534
        %536 = vperm.xlu0 %535, %v519
        %v537 = vpop.permute.xlu0 %536
        %v538 = vlaneseq
        %v539 = vshrl.u32 %v538, 7
        %v540 = vadd.s32 %v539, 24
        %541 = vset.pattern.permute.xlu0 %v540
        %542 = vperm.xlu0 %541, %v519
        %v543 = vpop.permute.xlu0 %542
        %v544 = vperm.slane %v385, 5
        %v545 = vlaneseq
        %v546 = vshrl.u32 %v545, 7
        %548 = vset.pattern.permute.xlu0 %v546
        %549 = vperm.xlu0 %548, %v544
        %v550 = vpop.permute.xlu0 %549
        %v551 = vlaneseq
        %v552 = vshrl.u32 %v551, 7
        %v553 = vadd.s32 %v552, 8
        %554 = vset.pattern.permute.xlu0 %v553
        %555 = vperm.xlu0 %554, %v544
        %v556 = vpop.permute.xlu0 %555
        %v557 = vlaneseq
        %v558 = vshrl.u32 %v557, 7
        %v559 = vadd.s32 %v558, 16
        %560 = vset.pattern.permute.xlu0 %v559
        %561 = vperm.xlu0 %560, %v544
        %v562 = vpop.permute.xlu0 %561
        %v563 = vlaneseq
        %v564 = vshrl.u32 %v563, 7
        %v565 = vadd.s32 %v564, 24
        %566 = vset.pattern.permute.xlu0 %v565
        %567 = vperm.xlu0 %566, %v544
        %v568 = vpop.permute.xlu0 %567
        %v569 = vperm.slane %v385, 6
        %v570 = vlaneseq
        %v571 = vshrl.u32 %v570, 7
        %573 = vset.pattern.permute.xlu0 %v571
        %574 = vperm.xlu0 %573, %v569
        %v575 = vpop.permute.xlu0 %574
        %v576 = vlaneseq
        %v577 = vshrl.u32 %v576, 7
        %v578 = vadd.s32 %v577, 8
        %579 = vset.pattern.permute.xlu0 %v578
        %580 = vperm.xlu0 %579, %v569
        %v581 = vpop.permute.xlu0 %580
        %v582 = vlaneseq
        %v583 = vshrl.u32 %v582, 7
        %v584 = vadd.s32 %v583, 16
        %585 = vset.pattern.permute.xlu0 %v584
        %586 = vperm.xlu0 %585, %v569
        %v587 = vpop.permute.xlu0 %586
        %v588 = vlaneseq
        %v589 = vshrl.u32 %v588, 7
        %v590 = vadd.s32 %v589, 24
        %591 = vset.pattern.permute.xlu0 %v590
        %592 = vperm.xlu0 %591, %v569
        %v593 = vpop.permute.xlu0 %592
        %v594 = vperm.slane %v385, 7
        %v595 = vlaneseq
        %v596 = vshrl.u32 %v595, 7
        %598 = vset.pattern.permute.xlu0 %v596
        %599 = vperm.xlu0 %598, %v594
        %v600 = vpop.permute.xlu0 %599
        %v601 = vlaneseq
        %v602 = vshrl.u32 %v601, 7
        %v603 = vadd.s32 %v602, 8
        %604 = vset.pattern.permute.xlu0 %v603
        %605 = vperm.xlu0 %604, %v594
        %v606 = vpop.permute.xlu0 %605
        %v607 = vlaneseq
        %v608 = vshrl.u32 %v607, 7
        %v609 = vadd.s32 %v608, 16
        %610 = vset.pattern.permute.xlu0 %v609
        %611 = vperm.xlu0 %610, %v594
        %v612 = vpop.permute.xlu0 %611
        %v613 = vlaneseq
        %v614 = vshrl.u32 %v613, 7
        %v615 = vadd.s32 %v614, 24
        %616 = vset.pattern.permute.xlu0 %v615
        %617 = vperm.xlu0 %616, %v594
        %v618 = vpop.permute.xlu0 %617
        %v619 = vunpack.c.l.bf16 %v387
        %v620 = vunpack.c.l.bf16 %v388
        %v621 = vunpack.c.l.bf16 %v389
        %v622 = vunpack.c.l.bf16 %v390
        %v623 = vunpack.c.l.bf16 %v391
        %v624 = vunpack.c.l.bf16 %v392
        %v625 = vunpack.c.l.bf16 %v393
        %v626 = vunpack.c.l.bf16 %v394
        %v627 = vunpack.c.l.bf16 %v395
        %v628 = vunpack.c.l.bf16 %v396
        %v629 = vunpack.c.l.bf16 %v397
        %v630 = vunpack.c.l.bf16 %v398
        %v631 = vunpack.c.l.bf16 %v399
        %v632 = vunpack.c.l.bf16 %v400
        %v633 = vunpack.c.l.bf16 %v401
        %v634 = vunpack.c.l.bf16 %v402
        %v635 = vunpack.c.l.bf16 %v403
        %v636 = vunpack.c.l.bf16 %v404
        %v637 = vunpack.c.l.bf16 %v405
        %v638 = vunpack.c.l.bf16 %v406
        %v639 = vunpack.c.l.bf16 %v407
        %v640 = vunpack.c.l.bf16 %v408
        %v641 = vunpack.c.l.bf16 %v409
        %v642 = vunpack.c.l.bf16 %v410
        %v643 = vunpack.c.l.bf16 %v411
        %v644 = vunpack.c.l.bf16 %v412
        %v645 = vunpack.c.l.bf16 %v413
        %v646 = vunpack.c.l.bf16 %v414
        %v647 = vunpack.c.l.bf16 %v415
        %v648 = vunpack.c.l.bf16 %v416
        %v649 = vunpack.c.l.bf16 %v417
        %v650 = vunpack.c.l.bf16 %v418
        %v651 = vmul.f32 %v425, %v619
        %v652 = vmul.f32 %v431, %v620
        %v653 = vmul.f32 %v437, %v621
        %v654 = vmul.f32 %v443, %v622
        %v655 = vmul.f32 %v450, %v623
        %v656 = vmul.f32 %v456, %v624
        %v657 = vmul.f32 %v462, %v625
        %v658 = vmul.f32 %v468, %v626
        %v659 = vmul.f32 %v475, %v627
        %v660 = vmul.f32 %v481, %v628
        %v661 = vmul.f32 %v487, %v629
        %v662 = vmul.f32 %v493, %v630
        %v663 = vmul.f32 %v500, %v631
        %v664 = vmul.f32 %v506, %v632
        %v665 = vmul.f32 %v512, %v633
        %v666 = vmul.f32 %v518, %v634
        %v667 = vmul.f32 %v525, %v635
        %v668 = vmul.f32 %v531, %v636
        %v669 = vmul.f32 %v537, %v637
        %v670 = vmul.f32 %v543, %v638
        %v671 = vmul.f32 %v550, %v639
        %v672 = vmul.f32 %v556, %v640
        %v673 = vmul.f32 %v562, %v641
        %v674 = vmul.f32 %v568, %v642
        %v675 = vmul.f32 %v575, %v643
        %v676 = vmul.f32 %v581, %v644
        %v677 = vmul.f32 %v587, %v645
        %v678 = vmul.f32 %v593, %v646
        %v679 = vmul.f32 %v600, %v647
        %v680 = vmul.f32 %v606, %v648
        %v681 = vmul.f32 %v612, %v649
        %v682 = vmul.f32 %v618, %v650
        %v683 = vadd.f32 %v651, %v652
        %v684 = vadd.f32 %v683, %v653
        %v685 = vadd.f32 %v684, %v654
        %v686 = vrot.slane %v685, 4
        %v687 = vadd.f32 %v685, %v686
        %v688 = vrot.slane %v687, 2
        %v689 = vadd.f32 %v687, %v688
        %v690 = vrot.slane %v689, 1
        %v691 = vadd.f32 %v689, %v690
        %v692 = vadd.f32 %v655, %v656
        %v693 = vadd.f32 %v692, %v657
        %v694 = vadd.f32 %v693, %v658
        %v695 = vrot.slane %v694, 4
        %v696 = vadd.f32 %v694, %v695
        %v697 = vrot.slane %v696, 2
        %v698 = vadd.f32 %v696, %v697
        %v699 = vrot.slane %v698, 1
        %v700 = vadd.f32 %v698, %v699
        %v701 = vadd.f32 %v659, %v660
        %v702 = vadd.f32 %v701, %v661
        %v703 = vadd.f32 %v702, %v662
        %v704 = vrot.slane %v703, 4
        %v705 = vadd.f32 %v703, %v704
        %v706 = vrot.slane %v705, 2
        %v707 = vadd.f32 %v705, %v706
        %v708 = vrot.slane %v707, 1
        %v709 = vadd.f32 %v707, %v708
        %v710 = vadd.f32 %v663, %v664
        %v711 = vadd.f32 %v710, %v665
        %v712 = vadd.f32 %v711, %v666
        %v713 = vrot.slane %v712, 4
        %v714 = vadd.f32 %v712, %v713
        %v715 = vrot.slane %v714, 2
        %v716 = vadd.f32 %v714, %v715
        %v717 = vrot.slane %v716, 1
        %v718 = vadd.f32 %v716, %v717
        %v719 = vadd.f32 %v667, %v668
        %v720 = vadd.f32 %v719, %v669
        %v721 = vadd.f32 %v720, %v670
        %v722 = vrot.slane %v721, 4
        %v723 = vadd.f32 %v721, %v722
        %v724 = vrot.slane %v723, 2
        %v725 = vadd.f32 %v723, %v724
        %v726 = vrot.slane %v725, 1
        %v727 = vadd.f32 %v725, %v726
        %v728 = vadd.f32 %v671, %v672
        %v729 = vadd.f32 %v728, %v673
        %v730 = vadd.f32 %v729, %v674
        %v731 = vrot.slane %v730, 4
        %v732 = vadd.f32 %v730, %v731
        %v733 = vrot.slane %v732, 2
        %v734 = vadd.f32 %v732, %v733
        %v735 = vrot.slane %v734, 1
        %v736 = vadd.f32 %v734, %v735
        %v737 = vadd.f32 %v675, %v676
        %v738 = vadd.f32 %v737, %v677
        %v739 = vadd.f32 %v738, %v678
        %v740 = vrot.slane %v739, 4
        %v741 = vadd.f32 %v739, %v740
        %v742 = vrot.slane %v741, 2
        %v743 = vadd.f32 %v741, %v742
        %v744 = vrot.slane %v743, 1
        %v745 = vadd.f32 %v743, %v744
        %v746 = vadd.f32 %v679, %v680
        %v747 = vadd.f32 %v746, %v681
        %v748 = vadd.f32 %v747, %v682
        %v749 = vrot.slane %v748, 4
        %v750 = vadd.f32 %v748, %v749
        %v751 = vrot.slane %v750, 2
        %v752 = vadd.f32 %v750, %v751
        %v753 = vrot.slane %v752, 1
        %v754 = vadd.f32 %v752, %v753
        %v755 = vlaneseq
        %v756 = vand.u32 %v755, 127
        %vm757 = vcmp.lt.s32.totalorder %v756, 8
        %v758 = vsub.f32 0.0, %v691
        %v759 = vsub.f32 0.0, %v700
        %v760 = vsub.f32 0.0, %v709
        %v761 = vsub.f32 0.0, %v718
        %v762 = vsub.f32 0.0, %v727
        %v763 = vsub.f32 0.0, %v736
        %v764 = vsub.f32 0.0, %v745
        %v765 = vsub.f32 0.0, %v754
        %vm774 = vcmask 1041409
        %v775 = vsel %vm774, %v700, %v691
        %vm776 = vcmask 1042434
        %v777 = vsel %vm776, %v709, %v775
        %vm778 = vcmask 1043459
        %v779 = vsel %vm778, %v718, %v777
        %vm780 = vcmask 1044484
        %v781 = vsel %vm780, %v727, %v779
        %vm782 = vcmask 1045509
        %v783 = vsel %vm782, %v736, %v781
        %vm784 = vcmask 1046534
        %v785 = vsel %vm784, %v745, %v783
        %vm786 = vcmask 1047559
        %v787 = vsel %vm786, %v754, %v785
        %v797 = vsel %vm774, %v759, %v758
        %v798 = vsel %vm776, %v760, %v797
        %v799 = vsel %vm778, %v761, %v798
        %v800 = vsel %vm780, %v762, %v799
        %v801 = vsel %vm782, %v763, %v800
        %v802 = vsel %vm784, %v764, %v801
        %v803 = vsel %vm786, %v765, %v802
        %v805 = vsel %vm757, %v787, %v803
        %v806 = vmin.f32 %v805, 0.0
        %v807 = vand.u32 2147483647, %v805
        %v808 = vsub.f32 0.0, %v807
        %v809 = vmul.f32 %v808, 1.442695
        %v810 = vpow.pop %v809
        %v811 = vadd.f32 %v810, 1.0
        %v812 = vlog2.pop %v811
        %v813 = vmul.f32 %v812, 0.6931472
        %v814 = vsub.f32 %v806, %v813
        %v815 = vmax.f32 %v814, -20.723267
        %816 = vadd.xlane.f32.xlu0 %v815
        %v817 = vpop.xlane.xlu0 %816
        %v818 = vld [vmem:[%s325] sm:$0xff]
        %v819 = vmul.f32 %v818, %v817
        %vm820 = vcmask 7168
        %v821 = vsel %vm820, %v819, 0.0
        %v822 = vrot.slane %v821, 4
        %v823 = vadd.f32 %v821, %v822
        %v824 = vrot.slane %v823, 2
        %v825 = vadd.f32 %v823, %v824
        %v826 = vrot.slane %v825, 1
        %v827 = vadd.f32 %v825, %v826
        %v828 = vsel %vm333, %v360, 0.0
        %829 = vadd.xlane.f32.xlu0 %v828
        %v830 = vpop.xlane.xlu0 %829
        %v831 = vmul.f32 %v818, %v830
        %v832 = vsel %vm820, %v831, 0.0
        %v833 = vrot.slane %v832, 4
        %v834 = vadd.f32 %v832, %v833
        %v835 = vrot.slane %v834, 2
        %v836 = vadd.f32 %v834, %v835
        %v837 = vrot.slane %v836, 1
        %v838 = vadd.f32 %v836, %v837
        %vm839 = vcmask 0
        %840 = vst.msk [vmem:[%s328] sm:$0x1] %vm839, %v827
        %841 = vst.msk [vmem:[%s331] sm:$0x1] %vm839, %v838
        %p842 = scmp.lt.s32.totalorder %s21, 3
        %s843 = scalar_select %p842, %s21, 3
        %s844 = scalar_lea.vmem %s5, %s843
        %p845 = scmp.lt.s32.totalorder %s21, 3
        %s846 = scalar_select %p845, %s21, 3
        %s847 = scalar_lea.vmem %s6, %s846
        // Predicated region
        $region45: #{tpu_custom_call.1} parent=39 // pred_check
          %p848 = pneg %p164
        $region46: #{tpu_custom_call.1} parent=39 // pred_check_branch
          %850 = sbr.rel (%p848) target = $region48
        $region47: #{tpu_custom_call.1} parent=39 // pred_region
          _
        $region48: #{tpu_custom_call.1} parent=39 // pred_fallthru
          _
        // Predicated region
        $region49: #{tpu_custom_call.1} parent=39 // pred_check
          %p851 = pneg %p190
        $region50: #{tpu_custom_call.1} parent=39 // pred_check_branch
          %853 = sbr.rel (%p851) target = $region52
        $region51: #{tpu_custom_call.1} parent=39 // pred_region
          _
        $region52: #{tpu_custom_call.1} parent=39 // pred_fallthru
          _
      $region40: #{tpu_custom_call.1} parent=5 // pred_fallthru
        _
      %p854 = scmp.le.s32.totalorder 2, %s16
      // Predicated region
      $region53: #{tpu_custom_call.1} parent=5 // pred_check
        %p855 = pneg %p854
      $region54: #{tpu_custom_call.1} parent=5 // pred_check_branch
        %857 = sbr.rel (%p855) target = $region56
      $region55: #{tpu_custom_call.1} parent=5 // pred_region
        %s858 = ssub.s32 %s16, 2
        // Predicated region
        $region57: #{tpu_custom_call.1} parent=55 // pred_check
          %p859 = pneg %p170
        $region58: #{tpu_custom_call.1} parent=55 // pred_check_branch
          %861 = sbr.rel (%p859) target = $region60
        $region59: #{tpu_custom_call.1} parent=55 // pred_region
          %p862 = scmp.lt.s32.totalorder %s22, 3
          %s863 = scalar_select %p862, %s22, 3
          %s864 = scalar_lea.vmem %s5, %s863
        $region60: #{tpu_custom_call.1} parent=55 // pred_fallthru
          _
        // Predicated region
        $region61: #{tpu_custom_call.1} parent=55 // pred_check
          %p865 = pneg %p196
        $region62: #{tpu_custom_call.1} parent=55 // pred_check_branch
          %867 = sbr.rel (%p865) target = $region64
        $region63: #{tpu_custom_call.1} parent=55 // pred_region
          %p868 = scmp.lt.s32.totalorder %s22, 3
          %s869 = scalar_select %p868, %s22, 3
          %s870 = scalar_lea.vmem %s6, %s869
        $region64: #{tpu_custom_call.1} parent=55 // pred_fallthru
          _
      $region56: #{tpu_custom_call.1} parent=5 // pred_fallthru
        _
    $region6: #{tpu_custom_call.1} parent=1 // loop_footer
      %s20 = sadd.s32 1, %s16
    $region7: #{tpu_custom_call.1} parent=1 // loop_footer_branch
      %15 = sbr.rel target = $region3
    $region8: #{tpu_custom_call.1} parent=1 // loop_exit
      _
    %871 = vsyncpa [#allocation3], 1
    %s872 = scalar_lea.sflag [#allocation3], 1
    %873 = vsyncpa %s872, 1

</llo_original>
